<compile_context>
chip_gen: v7x
topology: tpu7x:2x2x1
jax: 0.10.0
libtpu: 0.0.40
codegen_flags: <defaults>
</compile_context>

<pallas_src>
import jax
import jax.numpy as jnp
from jax.experimental import pallas as pl
from jax.experimental.pallas import tpu as pltpu

ALPHA = 0.5
TEMPERATURE = 4.0

_NSPLIT = 2          # leading "parallel" grid axis: 2 TCs on v7x, sequential elsewhere
_NEG_FILL = -1.0e9   # padding fill: very negative (exp -> 0, max unaffected) but finite


def _round_up(x, m):
    return (x + m - 1) // m * m


def _int_pow(x, n):
    """x**n for a static positive integer n via exponentiation-by-squaring."""
    result, base = None, x
    while n:
        if n & 1:
            result = base if result is None else result * base
        n >>= 1
        if n:
            base = base * base
    return result


def _tpu_vmem_bytes():
    try:
        info = pltpu.get_tpu_info()
        v = getattr(info, "vmem_capacity_bytes", None)
        if v:
            return int(v)
    except Exception:
        pass
    return 64 << 20   # conservative (v7x-sized) fallback


def _distill_kernel(n_ref, s_ref, t_ref, g_ref, out_ref, acc_ref):
    """One (TB, Cp) batch tile of one core-split: accumulate KL-sum and CE-sum."""
    core = pl.program_id(0)
    step = pl.program_id(1)
    n_steps = pl.num_programs(1)

    @pl.when(step == 0)
    def _init():
        acc_ref[0] = jnp.float32(0.0)
        acc_ref[1] = jnp.float32(0.0)

    s = s_ref[...].astype(jnp.float32)       # (TB, Cp) student logits
    t = t_ref[...].astype(jnp.float32)       # (TB, Cp) teacher logits
    g = g_ref[...]                           # (TB, 1)  student logit at label (f32)
    TB = s.shape[0]

    inv_T = jnp.float32(1.0 / TEMPERATURE)
    T = jnp.float32(TEMPERATURE)

    s_t = s * inv_T
    t_t = t * inv_T
    s_max = jnp.max(s_t, axis=1, keepdims=True)          # (TB, 1)
    t_max = jnp.max(t_t, axis=1, keepdims=True)          # (TB, 1)
    s_shift = s_t - s_max
    t_shift = t_t - t_max

    # Only two full-tile exps on the EUP.
    e_s = jnp.exp(s_shift)                                # (TB, Cp)
    e_t = jnp.exp(t_shift)                                # (TB, Cp)

    s_sum = jnp.sum(e_s, axis=1, keepdims=True)           # (TB, 1)
    s_lse = jnp.log(s_sum)
    t_sum = jnp.sum(e_t, axis=1, keepdims=True)
    log_t_sum = jnp.log(t_sum)

    # (TB,1) approx reciprocal (EUP) + one Newton step; never touches the full tile.
    r = pl.reciprocal(t_sum, approx=True)
    r = r * (jnp.float32(2.0) - t_sum * r)

    # KL rows: r * sum(e_t * (t_shift - s_shift)) + s_lse - log(t_sum)   (sum p_t = 1)
    kl_inner = jnp.sum(e_t * (t_shift - s_shift), axis=1, keepdims=True)
    kl_rows = r * kl_inner + s_lse - log_t_sum             # (TB, 1)

    # CE rows at full scale, reusing e_s: exp(s - max(s)) = exp(T*s_shift) = e_s**T.
    if float(TEMPERATURE).is_integer() and 1 <= TEMPERATURE <= 16:
        e_full = _int_pow(e_s, int(TEMPERATURE))           # 2 multiplies for T=4
    else:
        e_full = jnp.exp(s_shift * T)                      # fallback: non-integer T
    lse_full = jnp.log(jnp.sum(e_full, axis=1, keepdims=True))
    ce_rows = lse_full + T * s_max - g                     # (TB, 1)

    # Mask padded batch rows (always compiled; valid-row count is a runtime scalar).
    row0 = (core * n_steps + step) * TB
    row_ids = row0 + jax.lax.broadcasted_iota(jnp.int32, (TB, 1), 0)
    valid = (row_ids < n_ref[0]).astype(jnp.float32)

    acc_ref[0] += jnp.sum(kl_rows * valid)
    acc_ref[1] += jnp.sum(ce_rows * valid)

    @pl.when(step == n_steps - 1)
    def _finalize():
        # Per-split partial sums: row 0 = KL-sum, row 1 = CE-sum (broadcast over lanes).
        rows = jax.lax.broadcasted_iota(jnp.int32, (8, 128), 0)
        out_ref[...] = jnp.where(rows == 0, acc_ref[0], acc_ref[1])


def distillation_loss(student_logits, teacher_logits, labels, *,
                      block_rows=None, pad_classes=True):
    """student_logits, teacher_logits: (B, C) f32/bf16; labels: (B,) int."""
    B, C = student_logits.shape
    dtype = student_logits.dtype
    itemsize = jnp.dtype(dtype).itemsize
    row_mult = 16 if jnp.dtype(dtype) == jnp.bfloat16 else 8

    # Label gather in the wrapper: a tiny (B,1) f32 stream, removes the per-element
    # iota/compare/select/row-reduce from the VPU-bound kernel.
    labels_2d = labels.astype(jnp.int32).reshape(B, 1)
    gathered = jnp.take_along_axis(student_logits, labels_2d, axis=1).astype(jnp.float32)

    # Lane-pad the class dim to a multiple of 128 with a large-negative fill.
    # (Costs one extra HBM pass over the logits; set pad_classes=False to skip.)
    Cp = _round_up(C, 128) if pad_classes else C
    pad_c = Cp - C

    # Generation-aware tile size and VMEM limit.
    vmem_phys = _tpu_vmem_bytes()
    if vmem_phys <= (64 << 20):          # v7x-class: 64 MiB per TensorCore
        target_tile_bytes = 4 << 20
        vmem_cap = 48 << 20
    else:                                 # v5e / v6e: 128 MiB
        target_tile_bytes = 8 << 20
        vmem_cap = 96 << 20

    if block_rows is None:
        row_bytes_f32 = Cp * 4
        tb = max(row_mult, target_tile_bytes // row_bytes_f32)
        tb = max(row_mult, (tb // row_mult) * row_mult)
    else:
        tb = max(row_mult, (int(block_rows) // row_mult) * row_mult)
    per_split = -(-B // _NSPLIT)
    tb = min(tb, _round_up(per_split, row_mult))   # don't over-pad small batches
    TB = int(tb)

    padded_B = _round_up(B, TB * _NSPLIT)
    pad_r = padded_B - B
    S = padded_B // (TB * _NSPLIT)                 # steps per split

    if pad_r or pad_c:
        student_logits = jnp.pad(student_logits, ((0, pad_r), (0, pad_c)),
                                 constant_values=_NEG_FILL)
        teacher_logits = jnp.pad(teacher_logits, ((0, pad_r), (0, pad_c)),
                                 constant_values=_NEG_FILL)
    if pad_r:
        gathered = jnp.pad(gathered, ((0, pad_r), (0, 0)))

    n_valid = jnp.array([B], dtype=jnp.int32)

    # VMEM budget: 2 double-buffered logit streams + ~6 f32 full-tile temporaries.
    in_bytes = 2 * 2 * TB * Cp * itemsize + 2 * TB * 4
    tmp_bytes = 6 * TB * Cp * 4
    vmem_bytes = int(min(max(in_bytes + tmp_bytes + (2 << 20), 16 << 20), vmem_cap))

    grid_spec = pltpu.PrefetchScalarGridSpec(
        num_scalar_prefetch=1,
        grid=(_NSPLIT, S),
        in_specs=[
            pl.BlockSpec((TB, Cp), lambda c, i, n: (c * S + i, 0)),
            pl.BlockSpec((TB, Cp), lambda c, i, n: (c * S + i, 0)),
            pl.BlockSpec((TB, 1), lambda c, i, n: (c * S + i, 0)),
        ],
        out_specs=pl.BlockSpec((8, 128), lambda c, i, n: (0, c)),
        scratch_shapes=[pltpu.SMEM((2,), jnp.float32)],
    )

    partials = pl.pallas_call(
        _distill_kernel,
        out_shape=jax.ShapeDtypeStruct((8, _NSPLIT * 128), jnp.float32),
        grid_spec=grid_spec,
        compiler_params=pltpu.CompilerParams(
            dimension_semantics=("parallel", "arbitrary"),
            vmem_limit_bytes=vmem_bytes,
        ),
    )(n_valid, student_logits, teacher_logits, gathered)

    # Finalize on the per-split partials (row 0 = KL-sum, row 1 = CE-sum, lane 0).
    parts = partials.reshape(8, _NSPLIT, 128)
    kl_sum = jnp.sum(parts[0, :, 0])
    ce_sum = jnp.sum(parts[1, :, 0])
    inv_B = jnp.float32(1.0 / B)
    distill = kl_sum * inv_B * jnp.float32(TEMPERATURE * TEMPERATURE)
    ce = ce_sum * inv_B
    return jnp.float32(ALPHA) * distill + jnp.float32(1.0 - ALPHA) * ce


def _reference(student_logits, teacher_logits, labels):
    """Pure-JAX reference matching the PyTorch module semantics."""
    T = TEMPERATURE
    B = student_logits.shape[0]
    log_p_s = jax.nn.log_softmax(student_logits / T, axis=1)
    p_t = jax.nn.softmax(teacher_logits / T, axis=1)
    log_p_t = jax.nn.log_softmax(teacher_logits / T, axis=1)
    kl = jnp.sum(p_t * (log_p_t - log_p_s)) / B
    distill = kl * T * T
    log_sm = jax.nn.log_softmax(student_logits, axis=1)
    ce = -jnp.mean(jnp.take_along_axis(log_sm, labels[:, None], axis=1))
    return ALPHA * distill + (1.0 - ALPHA) * ce


if __name__ == "__main__":
    key = jax.random.PRNGKey(0)
    k1, k2, k3, k4, k5, k6 = jax.random.split(key, 6)

    # Case 1: small shapes, explicit tile, exercises row masking + 2-way split.
    B, C = 12, 32
    student = jax.random.normal(k1, (B, C), dtype=jnp.float32) * 2.0
    teacher = jax.random.normal(k2, (B, C), dtype=jnp.float32) * 2.0
    labels = jax.random.randint(k3, (B,), 0, C, dtype=jnp.int32)
    ref = _reference(student, teacher, labels)

    loss = jax.block_until_ready(
        distillation_loss(student, teacher, labels, block_rows=8))
    assert jnp.allclose(loss, ref, rtol=1e-4, atol=1e-4), (loss, ref)

    loss_auto = jax.block_until_ready(distillation_loss(student, teacher, labels))
    assert jnp.allclose(loss_auto, ref, rtol=1e-4, atol=1e-4), (loss_auto, ref)

    # Case 2: non-multiple-of-128 classes + multi-step accumulation per split.
    B2, C2 = 72, 100
    student2 = jax.random.normal(k4, (B2, C2), dtype=jnp.float32) * 2.0
    teacher2 = jax.random.normal(k5, (B2, C2), dtype=jnp.float32) * 2.0
    labels2 = jax.random.randint(k6, (B2,), 0, C2, dtype=jnp.int32)
    ref2 = _reference(student2, teacher2, labels2)

    loss2 = jax.block_until_ready(
        distillation_loss(student2, teacher2, labels2, block_rows=16))
    assert jnp.allclose(loss2, ref2, rtol=1e-4, atol=1e-4), (loss2, ref2)

    # Case 3: bf16 inputs (kernel upcasts per tile; 16-row tile alignment).
    student_bf = student2.astype(jnp.bfloat16)
    teacher_bf = teacher2.astype(jnp.bfloat16)
    ref_bf = _reference(student_bf.astype(jnp.float32),
                        teacher_bf.astype(jnp.float32), labels2)
    loss_bf = jax.block_until_ready(
        distillation_loss(student_bf, teacher_bf, labels2))
    assert jnp.allclose(loss_bf, ref_bf, rtol=2e-3, atol=2e-3), (loss_bf, ref_bf)

    print("KERNEL_OK")
</pallas_src>

<mosaic_0001>
module attributes {stable_mosaic.version = 11 : i64} {
  func.func @_distill_kernel(%arg0: i32, %arg1: i32, %arg2: memref<1xi32, #tpu.memory_space<smem>>, %arg3: memref<8x128xf32, #tpu.memory_space<vmem>>, %arg4: memref<8x128xf32, #tpu.memory_space<vmem>>, %arg5: memref<8x1xf32, #tpu.memory_space<vmem>>, %arg6: memref<8x128xf32, #tpu.memory_space<vmem>>, %arg7: memref<2xf32, #tpu.memory_space<smem>>) attributes {dimension_semantics = [#tpu.dimension_semantics<parallel>, #tpu.dimension_semantics<arbitrary>], iteration_bounds = array<i64: 2, 1>, scalar_prefetch = 1 : i64, scratch_operands = 1 : i64, tpu.core_type = #tpu.core_type<tc>, window_params = [{transform_indices = @transform_0, window_bounds = array<i64: 8, 128>}, {transform_indices = @transform_1, window_bounds = array<i64: 8, 128>}, {transform_indices = @transform_2, window_bounds = array<i64: 8, 1>}, {transform_indices = @transform_3, window_bounds = array<i64: 8, 128>}]} {
    %c0_i32 = arith.constant 0 : i32
    %0 = arith.cmpi eq, %arg1, %c0_i32 : i32
    %1 = arith.extui %0 : i1 to i32
    %c0_i32_0 = arith.constant 0 : i32
    %2 = arith.cmpi ne, %1, %c0_i32_0 : i32
    scf.if %2 {
      %cst_23 = arith.constant 0.000000e+00 : f32
      %c0_24 = arith.constant 0 : index
      %77 = memref.load %arg7[%c0_24] : memref<2xf32, #tpu.memory_space<smem>>
      memref.store %cst_23, %arg7[%c0_24] : memref<2xf32, #tpu.memory_space<smem>>
      %cst_25 = arith.constant 0.000000e+00 : f32
      %c1_26 = arith.constant 1 : index
      %78 = memref.load %arg7[%c1_26] : memref<2xf32, #tpu.memory_space<smem>>
      memref.store %cst_25, %arg7[%c1_26] : memref<2xf32, #tpu.memory_space<smem>>
    } else {
    }
    %c0 = arith.constant 0 : index
    %c0_1 = arith.constant 0 : index
    %3 = vector.load %arg3[%c0, %c0_1] : memref<8x128xf32, #tpu.memory_space<vmem>>, vector<8x128xf32>
    %c0_2 = arith.constant 0 : index
    %c0_3 = arith.constant 0 : index
    %4 = vector.load %arg4[%c0_2, %c0_3] : memref<8x128xf32, #tpu.memory_space<vmem>>, vector<8x128xf32>
    %c0_4 = arith.constant 0 : index
    %c0_5 = arith.constant 0 : index
    %5 = vector.load %arg5[%c0_4, %c0_5] : memref<8x1xf32, #tpu.memory_space<vmem>>, vector<8x1xf32>
    %cst = arith.constant 2.500000e-01 : f32
    %6 = vector.broadcast %cst : f32 to vector<8x128xf32>
    %7 = arith.mulf %3, %6 : vector<8x128xf32>
    %cst_6 = arith.constant 2.500000e-01 : f32
    %8 = vector.broadcast %cst_6 : f32 to vector<8x128xf32>
    %9 = arith.mulf %4, %8 : vector<8x128xf32>
    %cst_7 = arith.constant dense<0xFF800000> : vector<8xf32>
    %10 = vector.multi_reduction <maximumf>, %7, %cst_7 [1] : vector<8x128xf32> to vector<8xf32>
    %11 = vector.shape_cast %10 : vector<8xf32> to vector<8x1xf32>
    %cst_8 = arith.constant dense<0xFF800000> : vector<8xf32>
    %12 = vector.multi_reduction <maximumf>, %9, %cst_8 [1] : vector<8x128xf32> to vector<8xf32>
    %13 = vector.shape_cast %12 : vector<8xf32> to vector<8x1xf32>
    %14 = vector.broadcast %11 : vector<8x1xf32> to vector<8x128xf32>
    %15 = arith.subf %7, %14 : vector<8x128xf32>
    %16 = vector.broadcast %13 : vector<8x1xf32> to vector<8x128xf32>
    %17 = arith.subf %9, %16 : vector<8x128xf32>
    %18 = math.exp %15 : vector<8x128xf32>
    %19 = math.exp %17 : vector<8x128xf32>
    %cst_9 = arith.constant dense<0.000000e+00> : vector<8xf32>
    %20 = vector.multi_reduction <add>, %18, %cst_9 [1] : vector<8x128xf32> to vector<8xf32>
    %21 = vector.shape_cast %20 : vector<8xf32> to vector<8x1xf32>
    %22 = math.log %21 : vector<8x1xf32>
    %cst_10 = arith.constant dense<0.000000e+00> : vector<8xf32>
    %23 = vector.multi_reduction <add>, %19, %cst_10 [1] : vector<8x128xf32> to vector<8xf32>
    %24 = vector.shape_cast %23 : vector<8xf32> to vector<8x1xf32>
    %25 = math.log %24 : vector<8x1xf32>
    %26 = tpu.reciprocal %24 {approx = true} : vector<8x1xf32> -> vector<8x1xf32>
    %27 = arith.mulf %24, %26 : vector<8x1xf32>
    %cst_11 = arith.constant 2.000000e+00 : f32
    %28 = vector.broadcast %cst_11 : f32 to vector<8x1xf32>
    %29 = arith.subf %28, %27 : vector<8x1xf32>
    %30 = arith.mulf %26, %29 : vector<8x1xf32>
    %31 = arith.subf %17, %15 : vector<8x128xf32>
    %32 = arith.mulf %19, %31 : vector<8x128xf32>
    %cst_12 = arith.constant dense<0.000000e+00> : vector<8xf32>
    %33 = vector.multi_reduction <add>, %32, %cst_12 [1] : vector<8x128xf32> to vector<8xf32>
    %34 = vector.shape_cast %33 : vector<8xf32> to vector<8x1xf32>
    %35 = arith.mulf %30, %34 : vector<8x1xf32>
    %36 = arith.addf %35, %22 : vector<8x1xf32>
    %37 = arith.subf %36, %25 : vector<8x1xf32>
    %38 = arith.mulf %18, %18 : vector<8x128xf32>
    %39 = arith.mulf %38, %38 : vector<8x128xf32>
    %cst_13 = arith.constant dense<0.000000e+00> : vector<8xf32>
    %40 = vector.multi_reduction <add>, %39, %cst_13 [1] : vector<8x128xf32> to vector<8xf32>
    %41 = vector.shape_cast %40 : vector<8xf32> to vector<8x1xf32>
    %42 = math.log %41 : vector<8x1xf32>
    %cst_14 = arith.constant 4.000000e+00 : f32
    %43 = vector.broadcast %cst_14 : f32 to vector<8x1xf32>
    %44 = arith.mulf %43, %11 : vector<8x1xf32>
    %45 = arith.addf %42, %44 : vector<8x1xf32>
    %46 = arith.subf %45, %5 : vector<8x1xf32>
    %c1_i32 = arith.constant 1 : i32
    %47 = arith.muli %arg0, %c1_i32 : i32
    %48 = arith.addi %47, %arg1 : i32
    %c8_i32 = arith.constant 8 : i32
    %49 = arith.muli %48, %c8_i32 : i32
    %50 = tpu.iota {dimensions = array<i32: 0>} : vector<8x1xi32>
    %51 = vector.broadcast %49 : i32 to vector<8x1xi32>
    %52 = arith.addi %51, %50 : vector<8x1xi32>
    %c0_15 = arith.constant 0 : index
    %53 = memref.load %arg2[%c0_15] : memref<1xi32, #tpu.memory_space<smem>>
    %54 = vector.broadcast %53 : i32 to vector<8x1xi32>
    %55 = arith.cmpi slt, %52, %54 : vector<8x1xi32>
    %56 = arith.extui %55 : vector<8x1xi1> to vector<8x1xi32>
    %57 = arith.sitofp %56 : vector<8x1xi32> to vector<8x1xf32>
    %c0_16 = arith.constant 0 : index
    %58 = memref.load %arg7[%c0_16] : memref<2xf32, #tpu.memory_space<smem>>
    %59 = arith.mulf %37, %57 : vector<8x1xf32>
    %60 = vector.shape_cast %59 : vector<8x1xf32> to vector<1x8x1xf32>
    %cst_17 = arith.constant dense<0.000000e+00> : vector<1xf32>
    %61 = vector.multi_reduction <add>, %60, %cst_17 [1, 2] : vector<1x8x1xf32> to vector<1xf32>
    %62 = vector.shape_cast %61 : vector<1xf32> to vector<1x1x1xf32>
    %63 = vector.extract %62[0, 0, 0] : f32 from vector<1x1x1xf32>
    %64 = arith.addf %58, %63 : f32
    %c0_18 = arith.constant 0 : index
    %65 = memref.load %arg7[%c0_18] : memref<2xf32, #tpu.memory_space<smem>>
    memref.store %64, %arg7[%c0_18] : memref<2xf32, #tpu.memory_space<smem>>
    %c1 = arith.constant 1 : index
    %66 = memref.load %arg7[%c1] : memref<2xf32, #tpu.memory_space<smem>>
    %67 = arith.mulf %46, %57 : vector<8x1xf32>
    %68 = vector.shape_cast %67 : vector<8x1xf32> to vector<1x8x1xf32>
    %cst_19 = arith.constant dense<0.000000e+00> : vector<1xf32>
    %69 = vector.multi_reduction <add>, %68, %cst_19 [1, 2] : vector<1x8x1xf32> to vector<1xf32>
    %70 = vector.shape_cast %69 : vector<1xf32> to vector<1x1x1xf32>
    %71 = vector.extract %70[0, 0, 0] : f32 from vector<1x1x1xf32>
    %72 = arith.addf %66, %71 : f32
    %c1_20 = arith.constant 1 : index
    %73 = memref.load %arg7[%c1_20] : memref<2xf32, #tpu.memory_space<smem>>
    memref.store %72, %arg7[%c1_20] : memref<2xf32, #tpu.memory_space<smem>>
    %c0_i32_21 = arith.constant 0 : i32
    %74 = arith.cmpi eq, %arg1, %c0_i32_21 : i32
    %75 = arith.extui %74 : i1 to i32
    %c0_i32_22 = arith.constant 0 : i32
    %76 = arith.cmpi ne, %75, %c0_i32_22 : i32
    scf.if %76 {
      %77 = tpu.iota {dimensions = array<i32: 0>} : vector<8x128xi32>
      %c0_i32_23 = arith.constant 0 : i32
      %78 = vector.broadcast %c0_i32_23 : i32 to vector<8x128xi32>
      %79 = arith.cmpi eq, %77, %78 : vector<8x128xi32>
      %c0_24 = arith.constant 0 : index
      %80 = memref.load %arg7[%c0_24] : memref<2xf32, #tpu.memory_space<smem>>
      %c1_25 = arith.constant 1 : index
      %81 = memref.load %arg7[%c1_25] : memref<2xf32, #tpu.memory_space<smem>>
      %82 = vector.broadcast %80 : f32 to vector<8x128xf32>
      %83 = vector.broadcast %81 : f32 to vector<8x128xf32>
      %84 = arith.select %79, %82, %83 : vector<8x128xi1>, vector<8x128xf32>
      %c0_26 = arith.constant 0 : index
      %c0_27 = arith.constant 0 : index
      %85 = vector.load %arg6[%c0_26, %c0_27] : memref<8x128xf32, #tpu.memory_space<vmem>>, vector<8x128xf32>
      tpu.vector_store %arg6[%c0_26, %c0_27], %84 {strides = array<i32>} : memref<8x128xf32, #tpu.memory_space<vmem>>, vector<8x128xf32>,
    } else {
    }
    return
  }
  func.func @transform_0(%arg0: i32, %arg1: i32, %arg2: memref<1xi32, #tpu.memory_space<smem>>) -> (i32, i32) {
    %c1_i32 = arith.constant 1 : i32
    %0 = arith.muli %arg0, %c1_i32 : i32
    %1 = arith.addi %0, %arg1 : i32
    %c0_i32 = arith.constant 0 : i32
    %c0_i32_0 = arith.constant 0 : i32
    return %1, %c0_i32 : i32, i32
  }
  func.func @transform_1(%arg0: i32, %arg1: i32, %arg2: memref<1xi32, #tpu.memory_space<smem>>) -> (i32, i32) {
    %c1_i32 = arith.constant 1 : i32
    %0 = arith.muli %arg0, %c1_i32 : i32
    %1 = arith.addi %0, %arg1 : i32
    %c0_i32 = arith.constant 0 : i32
    %c0_i32_0 = arith.constant 0 : i32
    return %1, %c0_i32 : i32, i32
  }
  func.func @transform_2(%arg0: i32, %arg1: i32, %arg2: memref<1xi32, #tpu.memory_space<smem>>) -> (i32, i32) {
    %c1_i32 = arith.constant 1 : i32
    %0 = arith.muli %arg0, %c1_i32 : i32
    %1 = arith.addi %0, %arg1 : i32
    %c0_i32 = arith.constant 0 : i32
    %c0_i32_0 = arith.constant 0 : i32
    return %1, %c0_i32 : i32, i32
  }
  func.func @transform_3(%arg0: i32, %arg1: i32, %arg2: memref<1xi32, #tpu.memory_space<smem>>) -> (i32, i32) {
    %c0_i32 = arith.constant 0 : i32
    %c0_i32_0 = arith.constant 0 : i32
    return %c0_i32, %arg0 : i32, i32
  }
}

</mosaic_0001>

<llo_original>
// kernel: tpu_custom_call.1
$region0: #{tpu_custom_call.1}
  #allocation0 [shape = 'u32[]', space=smem, size = 0x4, offset = 0x4, fixed_abs, tag = 'smem constant byte address 0x4 - core index']
  #allocation1 [shape = 'u32[144,128]{1,0:T(1,128)}', space=vmem, size = 0x12000, scoped, tag = 'internal scratch']
  #allocation2 [shape = 'f32[2]{0:T(128)}', space=smem, size = 0x200, scoped, tag = 'scratch operand']
  #allocation3 [shape = 's32[1]{0}', space=sflag, size = 0x4, scoped, tag = 'scoped memory for tpu_custom_call.1']
  #allocation4 [shape = 's32[1]{0:T(128)S(6)}', space=smem, size = 0x200, scoped, tag = 'prefetched SMEM operand 0']
  %s0 = inlined_call_operand.<no memory space> [shape: s32[1], index: 0, kind: input, shape index: {}]
  %s1 = inlined_call_operand.vmem [shape: f32[16,128], index: 1, kind: input, shape index: {}]
  %s2 = inlined_call_operand.hbm [shape: f32[16,128], index: 2, kind: input, shape index: {}]
  %s3 = inlined_call_operand.vmem [shape: f32[16,1], index: 3, kind: input, shape index: {}]
  %s4 = inlined_call_operand.hbm [shape: f32[8,256], index: 4, kind: output, shape index: {}]
  %s5 = sld [smem:[#allocation0]]
  $region57: #{tpu_custom_call.1} parent=0
    _
  %s7 = ssub.s32 1, %s5
  %s8 = scalar_select 0, %s7, %s5
  %9 = sst [smem:[#allocation4]] %s0
  $region1: #{tpu_custom_call.1} parent=0
    #allocation5 [shape = 'u8[8192]{0}', space=vmem, size = 0x2000, scoped, tag = 'input window, operand 2']
    #allocation6 [shape = 's32[2]{0}', space=sflag, size = 0x8, scoped, tag = 'scoped memory for tpu_custom_call.1']
    #allocation7 [shape = 's32[2]{0}', space=sflag, size = 0x8, scoped, tag = 'scoped memory for tpu_custom_call.1']
    #allocation8 [shape = 'u8[8192]{0}', space=vmem, size = 0x2000, scoped, tag = 'output window, operand 0']
    %10 = vsyncpa [#allocation6], 0
    %s11 = scalar_lea.sflag [#allocation6], 1
    %12 = vsyncpa %s11, 0
    %13 = vsyncpa [#allocation7], 0
    %s14 = scalar_lea.sflag [#allocation7], 1
    %15 = vsyncpa %s14, 0
    loop: start=0, step=1, limit=4
    $region2: #{tpu_custom_call.1} parent=1 // loop_pre_header
      _
    $region3: #{tpu_custom_call.1} parent=1 // loop_header
      %s17 = sphi 0, %s21
      %p18 = scmp.ge.s32.totalorder %s17, 4
      %s24 = sphi 0, %s36
      %s25 = sphi 0, %s32
      %s26 = sphi 0, %s24
      %s27 = sphi 0, %s25
      %s28 = sphi 0, %s26
      %s29 = sphi 0, %s27
      %s41 = sphi 0, %s43
      %s44 = sphi 0, %s41
      %s45 = sphi 0, %s44
      %s61 = sphi 0, %s45
      %s69 = sphi 0, %s71
      %s72 = sphi 0, %s69
      %s73 = sphi 0, %s72
      %s89 = sphi 0, %s73
      %s97 = sphi 0, %s99
      %s100 = sphi 0, %s97
      %s101 = sphi 0, %s100
      %s117 = sphi 0, %s101
      %s123 = sphi 0, %s125
      %s126 = sphi 0, %s123
      %s127 = sphi 0, %s126
      %s143 = sphi 0, %s127
    $region4: #{tpu_custom_call.1} parent=1 // loop_header_branch
      %20 = sbr.rel (%p18) target = $region8
    $region5: #{tpu_custom_call.1} parent=1 // loop_body
      %s22 = ssub.s32 %s17, 1
      %s23 = ssub.s32 %s17, 2
      %s30 = sadd.s32 1, %s25
      %p31 = scmp.ge.s32.totalorder %s30, 1
      %s32 = scalar_select %p31, 0, %s30
      %s33 = sadd.s32 1, %s24
      %s34 = scalar_select %p31, %s33, %s24
      %p35 = scmp.ge.s32.totalorder %s34, 2
      %s36 = scalar_select %p35, 0, %s34
      %s37 = sadd.s32 %s24, %s25
      %s38 = sadd.s32 %s36, %s32
      %s39 = ssub.s32 %s37, %s38
      %p40 = scmp.eq.s32.totalorder %s39, 0
      %s42 = sadd.s32 %s41, 1
      %s43 = scalar_select %p40, %s41, %s42
      %p46 = pneg %p40
      %p47 = scmp.eq.s32.totalorder %s17, 1
      %p48 = por %p46, %p47
      %p49 = scmp.ne.s32.totalorder %s41, %s44
      %p50 = scmp.eq.s32.totalorder %s17, 0
      %p51 = por %p49, %p50
      %p52 = scmp.ne.s32.totalorder %s41, %s44
      %p53 = scmp.eq.s32.totalorder %s22, 1
      %p54 = por %p52, %p53
      %p55 = scmp.ne.s32.totalorder %s44, %s45
      %p56 = scmp.eq.s32.totalorder %s22, 0
      %p57 = por %p55, %p56
      %p58 = scmp.ne.s32.totalorder %s44, %s45
      %p59 = scmp.eq.s32.totalorder %s23, 1
      %p60 = por %p58, %p59
      %p62 = scmp.ne.s32.totalorder %s45, %s61
      %p63 = scmp.eq.s32.totalorder %s23, 0
      %p64 = por %p62, %p63
      %s65 = sadd.s32 %s24, %s25
      %s66 = sadd.s32 %s36, %s32
      %s67 = ssub.s32 %s65, %s66
      %p68 = scmp.eq.s32.totalorder %s67, 0
      %s70 = sadd.s32 %s69, 1
      %s71 = scalar_select %p68, %s69, %s70
      %p74 = pneg %p68
      %p75 = scmp.eq.s32.totalorder %s17, 1
      %p76 = por %p74, %p75
      %p77 = scmp.ne.s32.totalorder %s69, %s72
      %p78 = scmp.eq.s32.totalorder %s17, 0
      %p79 = por %p77, %p78
      %p80 = scmp.ne.s32.totalorder %s69, %s72
      %p81 = scmp.eq.s32.totalorder %s22, 1
      %p82 = por %p80, %p81
      %p83 = scmp.ne.s32.totalorder %s72, %s73
      %p84 = scmp.eq.s32.totalorder %s22, 0
      %p85 = por %p83, %p84
      %p86 = scmp.ne.s32.totalorder %s72, %s73
      %p87 = scmp.eq.s32.totalorder %s23, 1
      %p88 = por %p86, %p87
      %p90 = scmp.ne.s32.totalorder %s73, %s89
      %p91 = scmp.eq.s32.totalorder %s23, 0
      %p92 = por %p90, %p91
      %s93 = sadd.s32 %s24, %s25
      %s94 = sadd.s32 %s36, %s32
      %s95 = ssub.s32 %s93, %s94
      %p96 = scmp.eq.s32.totalorder %s95, 0
      %s98 = sadd.s32 %s97, 1
      %s99 = scalar_select %p96, %s97, %s98
      %p102 = pneg %p96
      %p103 = scmp.eq.s32.totalorder %s17, 1
      %p104 = por %p102, %p103
      %p105 = scmp.ne.s32.totalorder %s97, %s100
      %p106 = scmp.eq.s32.totalorder %s17, 0
      %p107 = por %p105, %p106
      %p108 = scmp.ne.s32.totalorder %s97, %s100
      %p109 = scmp.eq.s32.totalorder %s22, 1
      %p110 = por %p108, %p109
      %p111 = scmp.ne.s32.totalorder %s100, %s101
      %p112 = scmp.eq.s32.totalorder %s22, 0
      %p113 = por %p111, %p112
      %p114 = scmp.ne.s32.totalorder %s100, %s101
      %p115 = scmp.eq.s32.totalorder %s23, 1
      %p116 = por %p114, %p115
      %p118 = scmp.ne.s32.totalorder %s101, %s117
      %p119 = scmp.eq.s32.totalorder %s23, 0
      %p120 = por %p118, %p119
      %s121 = ssub.s32 %s24, %s36
      %p122 = scmp.eq.s32.totalorder %s121, 0
      %s124 = sadd.s32 %s123, 1
      %s125 = scalar_select %p122, %s123, %s124
      %p128 = pneg %p122
      %p129 = scmp.eq.s32.totalorder %s17, 1
      %p130 = por %p128, %p129
      %p131 = scmp.ne.s32.totalorder %s123, %s126
      %p132 = scmp.eq.s32.totalorder %s17, 0
      %p133 = por %p131, %p132
      %p134 = scmp.ne.s32.totalorder %s123, %s126
      %p135 = scmp.eq.s32.totalorder %s22, 1
      %p136 = por %p134, %p135
      %p137 = scmp.ne.s32.totalorder %s126, %s127
      %p138 = scmp.eq.s32.totalorder %s22, 0
      %p139 = por %p137, %p138
      %p140 = scmp.ne.s32.totalorder %s126, %s127
      %p141 = scmp.eq.s32.totalorder %s23, 1
      %p142 = por %p140, %p141
      %p144 = scmp.ne.s32.totalorder %s127, %s143
      %p145 = scmp.eq.s32.totalorder %s23, 0
      %p146 = por %p144, %p145
      %p147 = scmp.le.s32.totalorder 1, %s17
      %p148 = scmp.lt.s32.totalorder %s17, 3
      %p149 = pnand %p147, %p148
      %p150 = pneg %p149
      // Predicated region
      $region9: #{tpu_custom_call.1} parent=5 // pred_check
        _
      $region10: #{tpu_custom_call.1} parent=5 // pred_check_branch
        %152 = sbr.rel (%p149) target = $region12
      $region11: #{tpu_custom_call.1} parent=5 // pred_region
        %s153 = ssub.s32 %s17, 1
      $region12: #{tpu_custom_call.1} parent=5 // pred_fallthru
        _
      %p154 = scmp.lt.s32.totalorder %s17, 2
      // Predicated region
      $region13: #{tpu_custom_call.1} parent=5 // pred_check
        %p155 = pneg %p154
      $region14: #{tpu_custom_call.1} parent=5 // pred_check_branch
        %157 = sbr.rel (%p155) target = $region16
      $region15: #{tpu_custom_call.1} parent=5 // pred_region
        // Predicated region
        $region17: #{tpu_custom_call.1} parent=15 // pred_check
          %p158 = pneg %p51
        $region18: #{tpu_custom_call.1} parent=15 // pred_check_branch
          %160 = sbr.rel (%p158) target = $region20
        $region19: #{tpu_custom_call.1} parent=15 // pred_region
          %s161 = sadd.s32 %s24, %s25
          %p162 = scmp.lt.s32.totalorder %s161, 1
          %s163 = scalar_select %p162, %s161, 1
          %s164 = smul.addr %s163, 8
          %s165 = scalar_lea.vmem %s1, %s164
          %s166 = sadd.s32 %s24, %s25
        $region20: #{tpu_custom_call.1} parent=15 // pred_fallthru
          _
        // Predicated region
        $region21: #{tpu_custom_call.1} parent=15 // pred_check
          %p167 = pneg %p79
        $region22: #{tpu_custom_call.1} parent=15 // pred_check_branch
          %169 = sbr.rel (%p167) target = $region24
        $region23: #{tpu_custom_call.1} parent=15 // pred_region
          %s170 = sand.u32 %s69, 1
          %s171 = scalar_lea.sflag [#allocation6], %s170
          %s172 = sand.u32 %s69, 1
          %s173 = smul.addr %s172, 8
          %s174 = scalar_lea.vmem [#allocation5], %s173
          %s175 = sadd.s32 %s24, %s25
          %s177 = ssub.s32 128, 128
          %178 = vsyncadd %s171, %s177
          %s179 = smul.addr %s175, 128
          %s180 = scalar_lea.hbm %s2, %s179
          %s182 = sshll.u32 %s174, 4
          %s183 = int_to_ptr.vmem [resolvable:$true] %s182
          %185 = dma.hbm_to_vmem [thread:$0]  %s180, 128, %s183, %s171
        $region24: #{tpu_custom_call.1} parent=15 // pred_fallthru
          _
        // Predicated region
        $region25: #{tpu_custom_call.1} parent=15 // pred_check
          %p186 = pneg %p107
        $region26: #{tpu_custom_call.1} parent=15 // pred_check_branch
          %188 = sbr.rel (%p186) target = $region28
        $region27: #{tpu_custom_call.1} parent=15 // pred_region
          %s189 = sadd.s32 %s24, %s25
          %p190 = scmp.lt.s32.totalorder %s189, 1
          %s191 = scalar_select %p190, %s189, 1
          %s192 = smul.addr %s191, 8
          %s193 = scalar_lea.vmem %s3, %s192
          %s194 = sadd.s32 %s24, %s25
        $region28: #{tpu_custom_call.1} parent=15 // pred_fallthru
          _
      $region16: #{tpu_custom_call.1} parent=5 // pred_fallthru
        _
      %p195 = scmp.le.s32.totalorder 1, %s17
      %p196 = scmp.lt.s32.totalorder %s17, 3
      %p197 = pnand %p195, %p196
      %p198 = pneg %p197
      // Predicated region
      $region29: #{tpu_custom_call.1} parent=5 // pred_check
        _
      $region30: #{tpu_custom_call.1} parent=5 // pred_check_branch
        %200 = sbr.rel (%p197) target = $region32
      $region31: #{tpu_custom_call.1} parent=5 // pred_region
        %s201 = ssub.s32 %s17, 1
        %s202 = sand.u32 %s72, 1
        %s203 = scalar_lea.sflag [#allocation6], %s202
        %s204 = sand.u32 %s72, 1
        %s205 = smul.addr %s204, 8
        %s206 = scalar_lea.vmem [#allocation5], %s205
        // Predicated region
        $region33: #{tpu_custom_call.1} parent=31 // pred_check
          %p207 = pneg %p85
        $region34: #{tpu_custom_call.1} parent=31 // pred_check_branch
          %209 = sbr.rel (%p207) target = $region36
        $region35: #{tpu_custom_call.1} parent=31 // pred_region
          %210 = dma.done %s203, 128
        $region36: #{tpu_custom_call.1} parent=31 // pred_fallthru
          _
        %s211 = sadd.s32 %s26, %s27
        %p212 = scmp.lt.s32.totalorder %s211, 1
        %s213 = scalar_select %p212, %s211, 1
        %s214 = smul.addr %s213, 8
        %s215 = scalar_lea.vmem %s1, %s214
        %p216 = pneg %p57
        %p217 = pneg %p54
        %s218 = sand.u32 %s72, 1
        %s219 = scalar_lea.sflag [#allocation6], %s218
        %s220 = sand.u32 %s72, 1
        %s221 = smul.addr %s220, 8
        %s222 = scalar_lea.vmem [#allocation5], %s221
        %p223 = pneg %p85
        %p224 = pneg %p82
        %s225 = sadd.s32 %s26, %s27
        %p226 = scmp.lt.s32.totalorder %s225, 1
        %s227 = scalar_select %p226, %s225, 1
        %s228 = smul.addr %s227, 8
        %s229 = scalar_lea.vmem %s3, %s228
        %p230 = pneg %p113
        %p231 = pneg %p110
        %p232 = pneg %p139
        %p233 = pneg %p136
        %s234 = sand.u32 %s126, 1
        %s235 = scalar_lea.sflag [#allocation7], %s234
        %s236 = sand.u32 %s126, 1
        %s237 = smul.addr %s236, 8
        %s238 = scalar_lea.vmem [#allocation8], %s237
        %s239 = sadd.s32 %s26, %s27
        %p240 = scmp.lt.s32.totalorder %s239, 1
        %s241 = scalar_select %p240, %s239, 1
        %s242 = smul.addr %s241, 8
        %s243 = scalar_lea.vmem %s1, %s242
        %s244 = sadd.s32 %s26, %s27
        %s245 = sadd.s32 %s26, %s27
        %s246 = sadd.s32 %s26, %s27
        %p247 = scmp.lt.s32.totalorder %s246, 1
        %s248 = scalar_select %p247, %s246, 1
        %s249 = smul.addr %s248, 8
        %s250 = scalar_lea.vmem %s3, %s249
        %s251 = sadd.s32 %s26, %s27
        %p252 = scmp.eq.s32.totalorder %s27, 0
        // Predicated region
        $region37: #{tpu_custom_call.1} parent=31 // pred_check
          %p253 = pneg %p252
        $region38: #{tpu_custom_call.1} parent=31 // pred_check_branch
          %255 = sbr.rel (%p253) target = $region40
        $region39: #{tpu_custom_call.1} parent=31 // pred_region
          %s256 = scalar_lea.smem [#allocation2], 0
          %257 = sst [smem:[%s256]] 0.0
          %s258 = scalar_lea.smem [#allocation2], 1
          %259 = sst [smem:[%s258]] 0.0
        $region40: #{tpu_custom_call.1} parent=31 // pred_fallthru
          _
        %v260 = vld [vmem:[%s243] sm:$0xff]
        %v261 = vld [vmem:[%s206] sm:$0xff]
        %v262 = vld [vmem:[%s250] sm:$0xff]
        %v263 = vmul.f32 %v260, 0.25
        %v264 = vmul.f32 %v261, 0.25
        %265 = vmax.xlane.f32.xlu0 %v263
        %v266 = vpop.xlane.xlu0 %265
        %267 = vmax.xlane.f32.xlu0 %v264
        %v268 = vpop.xlane.xlu0 %267
        %v269 = vsub.f32 %v263, %v266
        %v270 = vsub.f32 %v264, %v268
        %v271 = vmul.f32 %v269, 1.442695
        %v272 = vpow.pop %v271
        %v273 = vmul.f32 %v270, 1.442695
        %v274 = vpow.pop %v273
        %275 = vadd.xlane.f32.xlu0 %v272
        %v276 = vpop.xlane.xlu0 %275
        %v277 = vlog2.pop %v276
        %v278 = vmul.f32 %v277, 0.6931472
        %279 = vadd.xlane.f32.xlu0 %v274
        %v280 = vpop.xlane.xlu0 %279
        %v281 = vlog2.pop %v280
        %v282 = vmul.f32 %v281, 0.6931472
        %v283 = vrcp.pop %v280
        %v284 = vmul.f32 %v280, %v283
        %v285 = vsub.f32 2.0, %v284
        %v286 = vmul.f32 %v283, %v285
        %v287 = vsub.f32 %v270, %v269
        %v288 = vmul.f32 %v274, %v287
        %289 = vadd.xlane.f32.xlu0 %v288
        %v290 = vpop.xlane.xlu0 %289
        %v291 = vmul.f32 %v286, %v290
        %v292 = vadd.f32 %v291, %v278
        %v293 = vsub.f32 %v292, %v282
        %v294 = vmul.f32 %v272, %v272
        %v295 = vmul.f32 %v294, %v294
        %296 = vadd.xlane.f32.xlu0 %v295
        %v297 = vpop.xlane.xlu0 %296
        %v298 = vlog2.pop %v297
        %v299 = vmul.f32 %v298, 0.6931472
        %v300 = vmul.f32 %v266, 4.0
        %v301 = vadd.f32 %v299, %v300
        %v302 = vsub.f32 %v301, %v262
        %s303 = sadd.s32 %s26, %s27
        %s304 = smul.u32 %s303, 8
        %v305 = vlaneseq
        %v306 = vshrl.u32 %v305, 7
        %v307 = vstv %s304
        %v308 = vadd.s32 %v307, %v306
        %s309 = sld [smem:[#allocation4]]
        %v310 = vstv %s309
        %vm311 = vcmp.lt.s32.totalorder %v308, %v310
        %v312 = vsel %vm311, 1, 0
        %v313 = vcvt.s32.f32 %v312
        %s314 = sld [smem:[#allocation2]]
        %v315 = vmul.f32 %v293, %v313
        %vm316 = vcmask 7168
        %v317 = vsel %vm316, %v315, 0.0
        %318 = vadd.xlane.f32.xlu0 %v317
        %v319 = vpop.xlane.xlu0 %318
        %v320 = vrot.slane %v319, 4
        %v321 = vadd.f32 %v319, %v320
        %v322 = vrot.slane %v321, 2
        %v323 = vadd.f32 %v321, %v322
        %v324 = vrot.slane %v323, 1
        %v325 = vadd.f32 %v323, %v324
        %s326 = vtos %v325
        %s327 = sadd.f32 %s314, %s326
        %s328 = scalar_lea.smem [#allocation2], 0
        %329 = sst [smem:[%s328]] %s327
        %s330 = sld [smem:[#allocation2 + $0x1]]
        %v331 = vmul.f32 %v302, %v313
        %v332 = vsel %vm316, %v331, 0.0
        %333 = vadd.xlane.f32.xlu0 %v332
        %v334 = vpop.xlane.xlu0 %333
        %v335 = vrot.slane %v334, 4
        %v336 = vadd.f32 %v334, %v335
        %v337 = vrot.slane %v336, 2
        %v338 = vadd.f32 %v336, %v337
        %v339 = vrot.slane %v338, 1
        %v340 = vadd.f32 %v338, %v339
        %s341 = vtos %v340
        %s342 = sadd.f32 %s330, %s341
        %s343 = scalar_lea.smem [#allocation2], 1
        %344 = sst [smem:[%s343]] %s342
        // Predicated region
        $region41: #{tpu_custom_call.1} parent=31 // pred_check
          %p345 = pneg %p252
        $region42: #{tpu_custom_call.1} parent=31 // pred_check_branch
          %347 = sbr.rel (%p345) target = $region44
        $region43: #{tpu_custom_call.1} parent=31 // pred_region
          %vm348 = vcmp.eq.s32.totalorder %v306, 0
          %s349 = sld [smem:[#allocation2]]
          %s350 = sld [smem:[#allocation2 + $0x1]]
          %v351 = vstv %s349
          %v352 = vstv %s350
          %v353 = vsel %vm348, %v351, %v352
          %354 = vst [vmem:[%s238] sm:$0xff] %v353
        $region44: #{tpu_custom_call.1} parent=31 // pred_fallthru
          _
        %s355 = sand.u32 %s126, 1
        %s356 = scalar_lea.sflag [#allocation7], %s355
        %s357 = sand.u32 %s126, 1
        %s358 = smul.addr %s357, 8
        %s359 = scalar_lea.vmem [#allocation8], %s358
        // Predicated region
        $region45: #{tpu_custom_call.1} parent=31 // pred_check
          %p360 = pneg %p136
        $region46: #{tpu_custom_call.1} parent=31 // pred_check_branch
          %362 = sbr.rel (%p360) target = $region48
        $region47: #{tpu_custom_call.1} parent=31 // pred_region
          %s364 = ssub.s32 128, 128
          %365 = vsyncadd %s356, %s364
          %s366 = smul.addr %s26, 128
          %s367 = scalar_lea.hbm %s4, %s366
          %s369 = sshll.u32 %s359, 4
          %s370 = int_to_ptr.vmem [resolvable:$true] %s369
          %372 = dma.vmem_to_hbm [thread:$0]  %s370, 128, %s367, %s356
        $region48: #{tpu_custom_call.1} parent=31 // pred_fallthru
          _
      $region32: #{tpu_custom_call.1} parent=5 // pred_fallthru
        _
      %p373 = scmp.le.s32.totalorder 2, %s17
      // Predicated region
      $region49: #{tpu_custom_call.1} parent=5 // pred_check
        %p374 = pneg %p373
      $region50: #{tpu_custom_call.1} parent=5 // pred_check_branch
        %376 = sbr.rel (%p374) target = $region52
      $region51: #{tpu_custom_call.1} parent=5 // pred_region
        %s377 = ssub.s32 %s17, 2
        // Predicated region
        $region53: #{tpu_custom_call.1} parent=51 // pred_check
          %p378 = pneg %p142
        $region54: #{tpu_custom_call.1} parent=51 // pred_check_branch
          %380 = sbr.rel (%p378) target = $region56
        $region55: #{tpu_custom_call.1} parent=51 // pred_region
          %s381 = sand.u32 %s127, 1
          %s382 = scalar_lea.sflag [#allocation7], %s381
          %s383 = sand.u32 %s127, 1
          %s384 = smul.addr %s383, 8
          %s385 = scalar_lea.vmem [#allocation8], %s384
          %386 = dma.done %s382, 128
        $region56: #{tpu_custom_call.1} parent=51 // pred_fallthru
          _
      $region52: #{tpu_custom_call.1} parent=5 // pred_fallthru
        _
    $region6: #{tpu_custom_call.1} parent=1 // loop_footer
      %s21 = sadd.s32 1, %s17
    $region7: #{tpu_custom_call.1} parent=1 // loop_footer_branch
      %16 = sbr.rel target = $region3
    $region8: #{tpu_custom_call.1} parent=1 // loop_exit
      _
    %387 = vsyncpa [#allocation6], 1
    %s388 = scalar_lea.sflag [#allocation6], 1
    %389 = vsyncpa %s388, 1
    %390 = vsyncpa [#allocation7], 1
    %s391 = scalar_lea.sflag [#allocation7], 1
    %392 = vsyncpa %s391, 1

</llo_original>
